<compile_context>
chip_gen: v5e
topology: v5e:2x2
jax: 0.10.0
libtpu: 0.0.40
codegen_flags: <defaults>
</compile_context>

<pallas_src>
import functools

import jax
import jax.numpy as jnp
from jax.experimental import pallas as pl
from jax.experimental.pallas import tpu as pltpu

LANE = 128
SUB = 8


def _dice_partial_kernel(x_ref, t_ref, out_ref, *, n_classes, do_softmax,
                         ragged, num_spatial_tiles, valid_in_last_tile):
    """x_ref: (C, Ts, 128) logits; t_ref: (Ts, 128) int32 labels;
    out_ref: (3*C, 128) sublane-reduced partial sums
    (rows 0..C-1 intersect, C..2C-1 z_sum, 2C..3C-1 y_sum)."""

    def body(valid):
        x = x_ref[...].astype(jnp.float32)                     # (C, Ts, 128)
        if do_softmax:
            m = jnp.max(x, axis=0, keepdims=True)               # (1, Ts, 128)
            e = jnp.exp(x - m)                                   # EUP
            denom = jnp.sum(e, axis=0, keepdims=True)
            inv = pl.reciprocal(denom, approx=True)              # EUP vrcp
            inv = inv * (2.0 - denom * inv)                      # 1 Newton step
            p = e * inv
        else:
            p = x

        labels = t_ref[...]                                      # (Ts, 128)
        inter, zsum, ysum = [], [], []
        for c in range(n_classes):                               # unrolled
            pc = p[c]                                            # (Ts, 128)
            oh = labels == c
            if valid is not None:
                oh = jnp.logical_and(oh, valid)
                pz = jnp.where(valid, pc * pc, 0.0)
            else:
                pz = pc * pc
            inter.append(jnp.sum(jnp.where(oh, pc, 0.0), axis=0, keepdims=True))
            zsum.append(jnp.sum(pz, axis=0, keepdims=True))
            ysum.append(jnp.sum(oh.astype(jnp.float32), axis=0, keepdims=True))
        # Single lane-dense store per grid step.
        out_ref[...] = jnp.concatenate(inter + zsum + ysum, axis=0)

    def masked_body():
        rows, lanes = t_ref.shape
        pos = (jax.lax.broadcasted_iota(jnp.int32, (rows, lanes), 0) * lanes
               + jax.lax.broadcasted_iota(jnp.int32, (rows, lanes), 1))
        body(pos < valid_in_last_tile)

    if not ragged:
        body(None)
    elif num_spatial_tiles == 1:
        masked_body()
    else:
        s = pl.program_id(1)
        last = num_spatial_tiles - 1

        @pl.when(s != last)
        def _():
            body(None)

        @pl.when(s == last)
        def _():
            masked_body()


def dice_loss(inputs, target, n_classes, weight=None, softmax=True,
              block_bytes=2 * 1024 * 1024):
    """Pallas implementation of DiceLoss.forward.

    inputs: (B, C, H, W) float logits (read in native dtype, f32 math in-kernel)
    target: (B, 1, H, W) integer labels in [0, n_classes)
    """
    B, C, H, W = inputs.shape
    assert C == n_classes, f"inputs have {C} channels, expected {n_classes}"
    HW = H * W

    HW128 = -(-HW // LANE) * LANE
    R = HW128 // LANE

    x = inputs.reshape(B, C, HW)
    t = target.reshape(B, HW).astype(jnp.int32)
    if HW128 != HW:
        # Tiny pad (< 128 elems) so the spatial axis folds into (rows, 128).
        # Padded labels are -1 (never match a class); padded logits are
        # masked in-kernel on the last tile.
        x = jnp.pad(x, ((0, 0), (0, 0), (0, HW128 - HW)))
        t = jnp.pad(t, ((0, 0), (0, HW128 - HW)), constant_values=-1)
    x = x.reshape(B, C, R, LANE)
    t = t.reshape(B, R, LANE)

    # --- spatial tile selection (rows per tile; multiple of 8 when split) ---
    rows_cap = max(SUB, (block_bytes // (LANE * 4 * C)) // SUB * SUB)
    if B == 1 and R >= 2 * SUB:
        # Keep at least two spatial tiles so both v7x TensorCores get work.
        rows_cap = min(rows_cap, ((R + 2 * SUB - 1) // (2 * SUB)) * SUB)
    if R <= rows_cap:
        Ts, S = R, 1          # single full-extent tile (always layout-legal)
    else:
        Ts = rows_cap
        S = -(-R // Ts)

    ragged = (S * Ts * LANE != HW)
    valid_in_last_tile = HW - (S - 1) * Ts * LANE

    kernel = functools.partial(
        _dice_partial_kernel, n_classes=C, do_softmax=bool(softmax),
        ragged=ragged, num_spatial_tiles=S,
        valid_in_last_tile=valid_in_last_tile)

    partial = pl.pallas_call(
        kernel,
        out_shape=jax.ShapeDtypeStruct((B, S, 3 * C, LANE), jnp.float32),
        grid_spec=pltpu.PrefetchScalarGridSpec(
            num_scalar_prefetch=0,
            grid=(B, S),
            in_specs=[
                pl.BlockSpec((None, C, Ts, LANE), lambda b, s: (b, 0, s, 0)),
                pl.BlockSpec((None, Ts, LANE), lambda b, s: (b, s, 0)),
            ],
            out_specs=pl.BlockSpec((None, None, 3 * C, LANE),
                                   lambda b, s: (b, s, 0, 0)),
        ),
        compiler_params=pltpu.CompilerParams(
            dimension_semantics=("parallel", "parallel"),
            vmem_limit_bytes=32 * 1024 * 1024),
    )(x, t)

    # Final reduction + dice formula on a tiny array in the wrapper.
    sums = jnp.sum(partial, axis=(0, 1, 3))          # (3*C,)
    smooth = 1e-05
    intersect = sums[:C]
    z_sum = sums[C:2 * C]
    y_sum = sums[2 * C:]
    dice = 1.0 - (2.0 * intersect + smooth) / (z_sum + y_sum + smooth)

    if weight is None:
        weight = [1.0] * n_classes
    w = jnp.asarray(weight, dtype=jnp.float32)
    return jnp.sum(dice * w) / n_classes


def _reference_dice_loss(inputs, target, n_classes, weight=None):
    # Pure-JAX reference mirroring the PyTorch module (f32 throughout).
    smooth = 1e-05
    p = jax.nn.softmax(inputs.astype(jnp.float32), axis=1)      # (B,C,H,W)
    labels = target[:, 0]                                       # (B,H,W)
    onehot = (labels[:, None, :, :] ==
              jnp.arange(n_classes)[None, :, None, None]).astype(jnp.float32)
    if weight is None:
        weight = [1.0] * n_classes
    loss = 0.0
    for i in range(n_classes):
        s = p[:, i]
        tgt = onehot[:, i]
        intersect = jnp.sum(s * tgt)
        y_sum = jnp.sum(tgt * tgt)
        z_sum = jnp.sum(s * s)
        dice = 1.0 - (2.0 * intersect + smooth) / (z_sum + y_sum + smooth)
        loss = loss + dice * weight[i]
    return loss / n_classes


if __name__ == "__main__":
    key = jax.random.PRNGKey(0)
    k1, k2, k3, k4, k5, k6 = jax.random.split(key, 6)

    # ---- test 1: 128-aligned spatial size, single tile (unmasked path) ----
    B, C, H, W = 2, 4, 16, 16
    inputs = jax.random.normal(k1, (B, C, H, W), dtype=jnp.float32)
    target = jax.random.randint(k2, (B, 1, H, W), 0, C, dtype=jnp.int32)
    loss = jax.block_until_ready(dice_loss(inputs, target, n_classes=C))
    ref = _reference_dice_loss(inputs, target, n_classes=C)
    assert jnp.allclose(loss, ref, rtol=2e-4, atol=1e-5), (loss, ref)

    # ---- test 2: unaligned spatial size + class weights (masked path) ----
    B2, C2, H2, W2 = 2, 6, 13, 13
    inputs2 = jax.random.normal(k3, (B2, C2, H2, W2), dtype=jnp.float32)
    target2 = jax.random.randint(k4, (B2, 1, H2, W2), 0, C2, dtype=jnp.int32)
    w2 = [0.5, 1.0, 1.5, 2.0, 0.75, 1.25]
    loss2 = jax.block_until_ready(
        dice_loss(inputs2, target2, n_classes=C2, weight=w2))
    ref2 = _reference_dice_loss(inputs2, target2, n_classes=C2, weight=w2)
    assert jnp.allclose(loss2, ref2, rtol=2e-4, atol=1e-5), (loss2, ref2)

    # ---- test 3: B=1, multi-tile grid with a partial last block ----
    B3, C3, H3, W3 = 1, 4, 48, 48
    inputs3 = jax.random.normal(k5, (B3, C3, H3, W3), dtype=jnp.float32)
    target3 = jax.random.randint(k6, (B3, 1, H3, W3), 0, C3, dtype=jnp.int32)
    loss3 = jax.block_until_ready(dice_loss(inputs3, target3, n_classes=C3))
    ref3 = _reference_dice_loss(inputs3, target3, n_classes=C3)
    assert jnp.allclose(loss3, ref3, rtol=2e-4, atol=1e-5), (loss3, ref3)

    print("KERNEL_OK")
</pallas_src>

<mosaic_0001>
module attributes {stable_mosaic.version = 11 : i64} {
  func.func @_dice_partial_kernel(%arg0: i32, %arg1: i32, %arg2: memref<1x4x2x128xf32, #tpu.memory_space<vmem>>, %arg3: memref<1x2x128xi32, #tpu.memory_space<vmem>>, %arg4: memref<1x1x12x128xf32, #tpu.memory_space<vmem>>) attributes {dimension_semantics = [#tpu.dimension_semantics<parallel>, #tpu.dimension_semantics<parallel>], iteration_bounds = array<i64: 2, 1>, scalar_prefetch = 0 : i64, scratch_operands = 0 : i64, tpu.core_type = #tpu.core_type<tc>, window_params = [{transform_indices = @transform_0, window_bounds = array<i64: 1, 4, 2, 128>}, {transform_indices = @transform_1, window_bounds = array<i64: 1, 2, 128>}, {transform_indices = @transform_2, window_bounds = array<i64: 1, 1, 12, 128>}]} {
    %c0 = arith.constant 0 : index
    %c0_0 = arith.constant 0 : index
    %c0_1 = arith.constant 0 : index
    %c0_2 = arith.constant 0 : index
    %0 = vector.load %arg2[%c0, %c0_0, %c0_1, %c0_2] : memref<1x4x2x128xf32, #tpu.memory_space<vmem>>, vector<1x4x2x128xf32>
    %1 = vector.shape_cast %0 : vector<1x4x2x128xf32> to vector<4x2x128xf32>
    %cst = arith.constant dense<0xFF800000> : vector<2x128xf32>
    %2 = vector.multi_reduction <maximumf>, %1, %cst [0] : vector<4x2x128xf32> to vector<2x128xf32>
    %3 = vector.shape_cast %2 : vector<2x128xf32> to vector<1x2x128xf32>
    %4 = vector.broadcast %3 : vector<1x2x128xf32> to vector<4x2x128xf32>
    %5 = arith.subf %1, %4 : vector<4x2x128xf32>
    %6 = math.exp %5 : vector<4x2x128xf32>
    %cst_3 = arith.constant dense<0.000000e+00> : vector<2x128xf32>
    %7 = vector.multi_reduction <add>, %6, %cst_3 [0] : vector<4x2x128xf32> to vector<2x128xf32>
    %8 = vector.shape_cast %7 : vector<2x128xf32> to vector<1x2x128xf32>
    %9 = tpu.reciprocal %8 {approx = true} : vector<1x2x128xf32> -> vector<1x2x128xf32>
    %10 = arith.mulf %8, %9 : vector<1x2x128xf32>
    %cst_4 = arith.constant 2.000000e+00 : f32
    %11 = vector.broadcast %cst_4 : f32 to vector<1x2x128xf32>
    %12 = arith.subf %11, %10 : vector<1x2x128xf32>
    %13 = arith.mulf %9, %12 : vector<1x2x128xf32>
    %14 = vector.broadcast %13 : vector<1x2x128xf32> to vector<4x2x128xf32>
    %15 = arith.mulf %6, %14 : vector<4x2x128xf32>
    %c0_5 = arith.constant 0 : index
    %c0_6 = arith.constant 0 : index
    %c0_7 = arith.constant 0 : index
    %16 = vector.load %arg3[%c0_5, %c0_6, %c0_7] : memref<1x2x128xi32, #tpu.memory_space<vmem>>, vector<1x2x128xi32>
    %17 = vector.shape_cast %16 : vector<1x2x128xi32> to vector<2x128xi32>
    %18 = vector.extract_strided_slice %15 {offsets = [0, 0, 0], sizes = [1, 2, 128], strides = [1, 1, 1]} : vector<4x2x128xf32> to vector<1x2x128xf32>
    %19 = vector.shape_cast %18 : vector<1x2x128xf32> to vector<2x128xf32>
    %c0_i32 = arith.constant 0 : i32
    %20 = vector.broadcast %c0_i32 : i32 to vector<2x128xi32>
    %21 = arith.cmpi eq, %17, %20 : vector<2x128xi32>
    %22 = arith.mulf %19, %19 : vector<2x128xf32>
    %cst_8 = arith.constant 0.000000e+00 : f32
    %23 = vector.broadcast %cst_8 : f32 to vector<2x128xf32>
    %24 = arith.select %21, %19, %23 : vector<2x128xi1>, vector<2x128xf32>
    %cst_9 = arith.constant dense<0.000000e+00> : vector<128xf32>
    %25 = vector.multi_reduction <add>, %24, %cst_9 [0] : vector<2x128xf32> to vector<128xf32>
    %26 = vector.shape_cast %25 : vector<128xf32> to vector<1x128xf32>
    %cst_10 = arith.constant dense<0.000000e+00> : vector<128xf32>
    %27 = vector.multi_reduction <add>, %22, %cst_10 [0] : vector<2x128xf32> to vector<128xf32>
    %28 = vector.shape_cast %27 : vector<128xf32> to vector<1x128xf32>
    %29 = arith.extui %21 : vector<2x128xi1> to vector<2x128xi32>
    %30 = arith.sitofp %29 : vector<2x128xi32> to vector<2x128xf32>
    %cst_11 = arith.constant dense<0.000000e+00> : vector<128xf32>
    %31 = vector.multi_reduction <add>, %30, %cst_11 [0] : vector<2x128xf32> to vector<128xf32>
    %32 = vector.shape_cast %31 : vector<128xf32> to vector<1x128xf32>
    %33 = vector.extract_strided_slice %15 {offsets = [1, 0, 0], sizes = [1, 2, 128], strides = [1, 1, 1]} : vector<4x2x128xf32> to vector<1x2x128xf32>
    %34 = vector.shape_cast %33 : vector<1x2x128xf32> to vector<2x128xf32>
    %c1_i32 = arith.constant 1 : i32
    %35 = vector.broadcast %c1_i32 : i32 to vector<2x128xi32>
    %36 = arith.cmpi eq, %17, %35 : vector<2x128xi32>
    %37 = arith.mulf %34, %34 : vector<2x128xf32>
    %cst_12 = arith.constant 0.000000e+00 : f32
    %38 = vector.broadcast %cst_12 : f32 to vector<2x128xf32>
    %39 = arith.select %36, %34, %38 : vector<2x128xi1>, vector<2x128xf32>
    %cst_13 = arith.constant dense<0.000000e+00> : vector<128xf32>
    %40 = vector.multi_reduction <add>, %39, %cst_13 [0] : vector<2x128xf32> to vector<128xf32>
    %41 = vector.shape_cast %40 : vector<128xf32> to vector<1x128xf32>
    %cst_14 = arith.constant dense<0.000000e+00> : vector<128xf32>
    %42 = vector.multi_reduction <add>, %37, %cst_14 [0] : vector<2x128xf32> to vector<128xf32>
    %43 = vector.shape_cast %42 : vector<128xf32> to vector<1x128xf32>
    %44 = arith.extui %36 : vector<2x128xi1> to vector<2x128xi32>
    %45 = arith.sitofp %44 : vector<2x128xi32> to vector<2x128xf32>
    %cst_15 = arith.constant dense<0.000000e+00> : vector<128xf32>
    %46 = vector.multi_reduction <add>, %45, %cst_15 [0] : vector<2x128xf32> to vector<128xf32>
    %47 = vector.shape_cast %46 : vector<128xf32> to vector<1x128xf32>
    %48 = vector.extract_strided_slice %15 {offsets = [2, 0, 0], sizes = [1, 2, 128], strides = [1, 1, 1]} : vector<4x2x128xf32> to vector<1x2x128xf32>
    %49 = vector.shape_cast %48 : vector<1x2x128xf32> to vector<2x128xf32>
    %c2_i32 = arith.constant 2 : i32
    %50 = vector.broadcast %c2_i32 : i32 to vector<2x128xi32>
    %51 = arith.cmpi eq, %17, %50 : vector<2x128xi32>
    %52 = arith.mulf %49, %49 : vector<2x128xf32>
    %cst_16 = arith.constant 0.000000e+00 : f32
    %53 = vector.broadcast %cst_16 : f32 to vector<2x128xf32>
    %54 = arith.select %51, %49, %53 : vector<2x128xi1>, vector<2x128xf32>
    %cst_17 = arith.constant dense<0.000000e+00> : vector<128xf32>
    %55 = vector.multi_reduction <add>, %54, %cst_17 [0] : vector<2x128xf32> to vector<128xf32>
    %56 = vector.shape_cast %55 : vector<128xf32> to vector<1x128xf32>
    %cst_18 = arith.constant dense<0.000000e+00> : vector<128xf32>
    %57 = vector.multi_reduction <add>, %52, %cst_18 [0] : vector<2x128xf32> to vector<128xf32>
    %58 = vector.shape_cast %57 : vector<128xf32> to vector<1x128xf32>
    %59 = arith.extui %51 : vector<2x128xi1> to vector<2x128xi32>
    %60 = arith.sitofp %59 : vector<2x128xi32> to vector<2x128xf32>
    %cst_19 = arith.constant dense<0.000000e+00> : vector<128xf32>
    %61 = vector.multi_reduction <add>, %60, %cst_19 [0] : vector<2x128xf32> to vector<128xf32>
    %62 = vector.shape_cast %61 : vector<128xf32> to vector<1x128xf32>
    %63 = vector.extract_strided_slice %15 {offsets = [3, 0, 0], sizes = [1, 2, 128], strides = [1, 1, 1]} : vector<4x2x128xf32> to vector<1x2x128xf32>
    %64 = vector.shape_cast %63 : vector<1x2x128xf32> to vector<2x128xf32>
    %c3_i32 = arith.constant 3 : i32
    %65 = vector.broadcast %c3_i32 : i32 to vector<2x128xi32>
    %66 = arith.cmpi eq, %17, %65 : vector<2x128xi32>
    %67 = arith.mulf %64, %64 : vector<2x128xf32>
    %cst_20 = arith.constant 0.000000e+00 : f32
    %68 = vector.broadcast %cst_20 : f32 to vector<2x128xf32>
    %69 = arith.select %66, %64, %68 : vector<2x128xi1>, vector<2x128xf32>
    %cst_21 = arith.constant dense<0.000000e+00> : vector<128xf32>
    %70 = vector.multi_reduction <add>, %69, %cst_21 [0] : vector<2x128xf32> to vector<128xf32>
    %71 = vector.shape_cast %70 : vector<128xf32> to vector<1x128xf32>
    %cst_22 = arith.constant dense<0.000000e+00> : vector<128xf32>
    %72 = vector.multi_reduction <add>, %67, %cst_22 [0] : vector<2x128xf32> to vector<128xf32>
    %73 = vector.shape_cast %72 : vector<128xf32> to vector<1x128xf32>
    %74 = arith.extui %66 : vector<2x128xi1> to vector<2x128xi32>
    %75 = arith.sitofp %74 : vector<2x128xi32> to vector<2x128xf32>
    %cst_23 = arith.constant dense<0.000000e+00> : vector<128xf32>
    %76 = vector.multi_reduction <add>, %75, %cst_23 [0] : vector<2x128xf32> to vector<128xf32>
    %77 = vector.shape_cast %76 : vector<128xf32> to vector<1x128xf32>
    %78 = tpu.concatenate %26, %41, %56, %71, %28, %43, %58, %73, %32, %47, %62, %77 in 0 : vector<1x128xf32>, vector<1x128xf32>, vector<1x128xf32>, vector<1x128xf32>, vector<1x128xf32>, vector<1x128xf32>, vector<1x128xf32>, vector<1x128xf32>, vector<1x128xf32>, vector<1x128xf32>, vector<1x128xf32>, vector<1x128xf32> -> vector<12x128xf32>
    %c0_24 = arith.constant 0 : index
    %c0_25 = arith.constant 0 : index
    %c0_26 = arith.constant 0 : index
    %c0_27 = arith.constant 0 : index
    %79 = vector.load %arg4[%c0_24, %c0_25, %c0_26, %c0_27] : memref<1x1x12x128xf32, #tpu.memory_space<vmem>>, vector<1x1x12x128xf32>
    %80 = vector.shape_cast %79 : vector<1x1x12x128xf32> to vector<12x128xf32>
    %81 = vector.shape_cast %78 : vector<12x128xf32> to vector<1x1x12x128xf32>
    tpu.vector_store %arg4[%c0_24, %c0_25, %c0_26, %c0_27], %81 {strides = array<i32>} : memref<1x1x12x128xf32, #tpu.memory_space<vmem>>, vector<1x1x12x128xf32>,
    return
  }
  func.func @transform_0(%arg0: i32, %arg1: i32) -> (i32, i32, i32, i32) {
    %c0_i32 = arith.constant 0 : i32
    %c0_i32_0 = arith.constant 0 : i32
    %c0_i32_1 = arith.constant 0 : i32
    return %arg0, %c0_i32, %arg1, %c0_i32_0 : i32, i32, i32, i32
  }
  func.func @transform_1(%arg0: i32, %arg1: i32) -> (i32, i32, i32) {
    %c0_i32 = arith.constant 0 : i32
    %c0_i32_0 = arith.constant 0 : i32
    return %arg0, %arg1, %c0_i32 : i32, i32, i32
  }
  func.func @transform_2(%arg0: i32, %arg1: i32) -> (i32, i32, i32, i32) {
    %c0_i32 = arith.constant 0 : i32
    %c0_i32_0 = arith.constant 0 : i32
    %c0_i32_1 = arith.constant 0 : i32
    return %arg0, %arg1, %c0_i32, %c0_i32_0 : i32, i32, i32, i32
  }
}

</mosaic_0001>

<llo_original>
// kernel: tpu_custom_call.1
$region0: #{tpu_custom_call.1}
  #allocation0 [shape = 'u32[]', space=smem, size = 0x4, offset = 0x4, fixed_abs, tag = 'smem constant byte address 0x4 - core index']
  #allocation1 [shape = 'u32[72,128]{1,0:T(1,128)}', space=vmem, size = 0x9000, scoped, tag = 'internal scratch']
  %s0 = inlined_call_operand.hbm [shape: f32[2,4,2,128], index: 0, kind: input, shape index: {}]
  %s1 = inlined_call_operand.hbm [shape: s32[2,2,128], index: 1, kind: input, shape index: {}]
  %s2 = inlined_call_operand.vmem [shape: f32[2,1,12,128], index: 2, kind: output, shape index: {}]
  %s3 = sld [smem:[#allocation0]]
  $region49: #{tpu_custom_call.1} parent=0
    _
  %s5 = ssub.s32 1, %s3
  %s6 = scalar_select 0, %s5, %s3
  $region1: #{tpu_custom_call.1} parent=0
    #allocation2 [shape = 'u8[8192]{0}', space=vmem, size = 0x2000, scoped, tag = 'input window, operand 0']
    #allocation3 [shape = 's32[2]{0}', space=sflag, size = 0x8, scoped, tag = 'scoped memory for tpu_custom_call.1']
    #allocation4 [shape = 'u8[2048]{0}', space=vmem, size = 0x800, scoped, tag = 'input window, operand 1']
    #allocation5 [shape = 's32[2]{0}', space=sflag, size = 0x8, scoped, tag = 'scoped memory for tpu_custom_call.1']
    %7 = vsyncpa [#allocation3], 0
    %s8 = scalar_lea.sflag [#allocation3], 1
    %9 = vsyncpa %s8, 0
    %10 = vsyncpa [#allocation5], 0
    %s11 = scalar_lea.sflag [#allocation5], 1
    %12 = vsyncpa %s11, 0
    loop: start=0, step=1, limit=4
    $region2: #{tpu_custom_call.1} parent=1 // loop_pre_header
      _
    $region3: #{tpu_custom_call.1} parent=1 // loop_header
      %s14 = sphi 0, %s18
      %p15 = scmp.ge.s32.totalorder %s14, 4
      %s21 = sphi 0, %s33
      %s22 = sphi 0, %s29
      %s23 = sphi 0, %s21
      %s24 = sphi 0, %s22
      %s25 = sphi 0, %s23
      %s26 = sphi 0, %s24
      %s38 = sphi 0, %s40
      %s41 = sphi 0, %s38
      %s42 = sphi 0, %s41
      %s58 = sphi 0, %s42
      %s66 = sphi 0, %s68
      %s69 = sphi 0, %s66
      %s70 = sphi 0, %s69
      %s86 = sphi 0, %s70
      %s94 = sphi 0, %s96
      %s97 = sphi 0, %s94
      %s98 = sphi 0, %s97
      %s114 = sphi 0, %s98
    $region4: #{tpu_custom_call.1} parent=1 // loop_header_branch
      %17 = sbr.rel (%p15) target = $region8
    $region5: #{tpu_custom_call.1} parent=1 // loop_body
      %s19 = ssub.s32 %s14, 1
      %s20 = ssub.s32 %s14, 2
      %s27 = sadd.s32 1, %s22
      %p28 = scmp.ge.s32.totalorder %s27, 1
      %s29 = scalar_select %p28, 0, %s27
      %s30 = sadd.s32 1, %s21
      %s31 = scalar_select %p28, %s30, %s21
      %p32 = scmp.ge.s32.totalorder %s31, 2
      %s33 = scalar_select %p32, 0, %s31
      %s34 = ssub.s32 %s21, %s33
      %s35 = ssub.s32 %s22, %s29
      %s36 = sor.u32 %s34, %s35
      %p37 = scmp.eq.s32.totalorder %s36, 0
      %s39 = sadd.s32 %s38, 1
      %s40 = scalar_select %p37, %s38, %s39
      %p43 = pneg %p37
      %p44 = scmp.eq.s32.totalorder %s14, 1
      %p45 = por %p43, %p44
      %p46 = scmp.ne.s32.totalorder %s38, %s41
      %p47 = scmp.eq.s32.totalorder %s14, 0
      %p48 = por %p46, %p47
      %p49 = scmp.ne.s32.totalorder %s38, %s41
      %p50 = scmp.eq.s32.totalorder %s19, 1
      %p51 = por %p49, %p50
      %p52 = scmp.ne.s32.totalorder %s41, %s42
      %p53 = scmp.eq.s32.totalorder %s19, 0
      %p54 = por %p52, %p53
      %p55 = scmp.ne.s32.totalorder %s41, %s42
      %p56 = scmp.eq.s32.totalorder %s20, 1
      %p57 = por %p55, %p56
      %p59 = scmp.ne.s32.totalorder %s42, %s58
      %p60 = scmp.eq.s32.totalorder %s20, 0
      %p61 = por %p59, %p60
      %s62 = ssub.s32 %s21, %s33
      %s63 = ssub.s32 %s22, %s29
      %s64 = sor.u32 %s62, %s63
      %p65 = scmp.eq.s32.totalorder %s64, 0
      %s67 = sadd.s32 %s66, 1
      %s68 = scalar_select %p65, %s66, %s67
      %p71 = pneg %p65
      %p72 = scmp.eq.s32.totalorder %s14, 1
      %p73 = por %p71, %p72
      %p74 = scmp.ne.s32.totalorder %s66, %s69
      %p75 = scmp.eq.s32.totalorder %s14, 0
      %p76 = por %p74, %p75
      %p77 = scmp.ne.s32.totalorder %s66, %s69
      %p78 = scmp.eq.s32.totalorder %s19, 1
      %p79 = por %p77, %p78
      %p80 = scmp.ne.s32.totalorder %s69, %s70
      %p81 = scmp.eq.s32.totalorder %s19, 0
      %p82 = por %p80, %p81
      %p83 = scmp.ne.s32.totalorder %s69, %s70
      %p84 = scmp.eq.s32.totalorder %s20, 1
      %p85 = por %p83, %p84
      %p87 = scmp.ne.s32.totalorder %s70, %s86
      %p88 = scmp.eq.s32.totalorder %s20, 0
      %p89 = por %p87, %p88
      %s90 = ssub.s32 %s21, %s33
      %s91 = ssub.s32 %s22, %s29
      %s92 = sor.u32 %s90, %s91
      %p93 = scmp.eq.s32.totalorder %s92, 0
      %s95 = sadd.s32 %s94, 1
      %s96 = scalar_select %p93, %s94, %s95
      %p99 = pneg %p93
      %p100 = scmp.eq.s32.totalorder %s14, 1
      %p101 = por %p99, %p100
      %p102 = scmp.ne.s32.totalorder %s94, %s97
      %p103 = scmp.eq.s32.totalorder %s14, 0
      %p104 = por %p102, %p103
      %p105 = scmp.ne.s32.totalorder %s94, %s97
      %p106 = scmp.eq.s32.totalorder %s19, 1
      %p107 = por %p105, %p106
      %p108 = scmp.ne.s32.totalorder %s97, %s98
      %p109 = scmp.eq.s32.totalorder %s19, 0
      %p110 = por %p108, %p109
      %p111 = scmp.ne.s32.totalorder %s97, %s98
      %p112 = scmp.eq.s32.totalorder %s20, 1
      %p113 = por %p111, %p112
      %p115 = scmp.ne.s32.totalorder %s98, %s114
      %p116 = scmp.eq.s32.totalorder %s20, 0
      %p117 = por %p115, %p116
      %p118 = scmp.le.s32.totalorder 1, %s14
      %p119 = scmp.lt.s32.totalorder %s14, 3
      %p120 = pnand %p118, %p119
      %p121 = pneg %p120
      // Predicated region
      $region9: #{tpu_custom_call.1} parent=5 // pred_check
        _
      $region10: #{tpu_custom_call.1} parent=5 // pred_check_branch
        %123 = sbr.rel (%p120) target = $region12
      $region11: #{tpu_custom_call.1} parent=5 // pred_region
        %s124 = ssub.s32 %s14, 1
      $region12: #{tpu_custom_call.1} parent=5 // pred_fallthru
        _
      %p125 = scmp.lt.s32.totalorder %s14, 2
      // Predicated region
      $region13: #{tpu_custom_call.1} parent=5 // pred_check
        %p126 = pneg %p125
      $region14: #{tpu_custom_call.1} parent=5 // pred_check_branch
        %128 = sbr.rel (%p126) target = $region16
      $region15: #{tpu_custom_call.1} parent=5 // pred_region
        // Predicated region
        $region17: #{tpu_custom_call.1} parent=15 // pred_check
          %p129 = pneg %p48
        $region18: #{tpu_custom_call.1} parent=15 // pred_check_branch
          %131 = sbr.rel (%p129) target = $region20
        $region19: #{tpu_custom_call.1} parent=15 // pred_region
          %s132 = sand.u32 %s38, 1
          %s133 = scalar_lea.sflag [#allocation3], %s132
          %s134 = sand.u32 %s38, 1
          %s135 = smul.addr %s134, 8
          %s136 = scalar_lea.vmem [#allocation2], %s135
          %138 = vsyncadd %s133, 0
          %s139 = smul.addr %s21, 4
          %s140 = sadd.s32 %s22, %s139
          %s141 = smul.addr %s140, 2
          %s142 = scalar_lea.hbm %s0, %s141
          %s143 = sshll.u32 %s142, 4
          %s144 = int_to_ptr.hbm [resolvable:$true] %s143
          %s145 = sshll.u32 %s136, 4
          %s146 = int_to_ptr.vmem [resolvable:$true] %s145
          %151 = dma.hbm_to_vmem [thread:$0]  %s144, 128, %s146, %s133, 32, 32, 2
        $region20: #{tpu_custom_call.1} parent=15 // pred_fallthru
          _
        // Predicated region
        $region21: #{tpu_custom_call.1} parent=15 // pred_check
          %p152 = pneg %p76
        $region22: #{tpu_custom_call.1} parent=15 // pred_check_branch
          %154 = sbr.rel (%p152) target = $region24
        $region23: #{tpu_custom_call.1} parent=15 // pred_region
          %s155 = sand.u32 %s66, 1
          %s156 = scalar_lea.sflag [#allocation5], %s155
          %s157 = sand.u32 %s66, 1
          %s158 = smul.addr %s157, 2
          %s159 = scalar_lea.vmem [#allocation4], %s158
          %161 = vsyncadd %s156, 0
          %s162 = sadd.s32 %s22, %s21
          %s163 = smul.addr %s162, 2
          %s164 = scalar_lea.hbm %s1, %s163
          %s166 = sshll.u32 %s164, 4
          %s167 = int_to_ptr.hbm [resolvable:$true] %s166
          %s168 = sshll.u32 %s159, 4
          %s169 = int_to_ptr.vmem [resolvable:$true] %s168
          %171 = dma.hbm_to_vmem [thread:$0]  %s167, 32, %s169, %s156
        $region24: #{tpu_custom_call.1} parent=15 // pred_fallthru
          _
      $region16: #{tpu_custom_call.1} parent=5 // pred_fallthru
        _
      %p172 = scmp.le.s32.totalorder 1, %s14
      %p173 = scmp.lt.s32.totalorder %s14, 3
      %p174 = pnand %p172, %p173
      %p175 = pneg %p174
      // Predicated region
      $region25: #{tpu_custom_call.1} parent=5 // pred_check
        _
      $region26: #{tpu_custom_call.1} parent=5 // pred_check_branch
        %177 = sbr.rel (%p174) target = $region28
      $region27: #{tpu_custom_call.1} parent=5 // pred_region
        %s178 = ssub.s32 %s14, 1
        %s179 = sand.u32 %s41, 1
        %s180 = scalar_lea.sflag [#allocation3], %s179
        %s181 = sand.u32 %s41, 1
        %s182 = smul.addr %s181, 8
        %s183 = scalar_lea.vmem [#allocation2], %s182
        // Predicated region
        $region29: #{tpu_custom_call.1} parent=27 // pred_check
          %p184 = pneg %p54
        $region30: #{tpu_custom_call.1} parent=27 // pred_check_branch
          %186 = sbr.rel (%p184) target = $region32
        $region31: #{tpu_custom_call.1} parent=27 // pred_region
          %188 = dma.done %s180, 128
        $region32: #{tpu_custom_call.1} parent=27 // pred_fallthru
          _
        %s189 = sand.u32 %s69, 1
        %s190 = scalar_lea.sflag [#allocation5], %s189
        %s191 = sand.u32 %s69, 1
        %s192 = smul.addr %s191, 2
        %s193 = scalar_lea.vmem [#allocation4], %s192
        // Predicated region
        $region33: #{tpu_custom_call.1} parent=27 // pred_check
          %p194 = pneg %p82
        $region34: #{tpu_custom_call.1} parent=27 // pred_check_branch
          %196 = sbr.rel (%p194) target = $region36
        $region35: #{tpu_custom_call.1} parent=27 // pred_region
          %198 = dma.done %s190, 32
        $region36: #{tpu_custom_call.1} parent=27 // pred_fallthru
          _
        %s199 = sand.u32 %s41, 1
        %s200 = scalar_lea.sflag [#allocation3], %s199
        %s201 = sand.u32 %s41, 1
        %s202 = smul.addr %s201, 8
        %s203 = scalar_lea.vmem [#allocation2], %s202
        %p204 = pneg %p54
        %p205 = pneg %p51
        %s206 = sand.u32 %s69, 1
        %s207 = scalar_lea.sflag [#allocation5], %s206
        %s208 = sand.u32 %s69, 1
        %s209 = smul.addr %s208, 2
        %s210 = scalar_lea.vmem [#allocation4], %s209
        %p211 = pneg %p82
        %p212 = pneg %p79
        %p213 = pneg %p110
        %p214 = pneg %p107
        %p215 = scmp.lt.s32.totalorder %s23, 1
        %s216 = scalar_select %p215, %s23, 1
        %p217 = scmp.lt.s32.totalorder %s24, 0
        %s218 = scalar_select %p217, %s24, 0
        %s219 = smul.addr %s218, 2
        %s220 = smul.addr %s216, 2
        %s221 = sadd.s32 %s219, %s220
        %s222 = smul.addr %s221, 8
        %s223 = scalar_lea.vmem %s2, %s222
        %p224 = scmp.lt.s32.totalorder %s23, 1
        %s225 = scalar_select %p224, %s23, 1
        %p226 = scmp.lt.s32.totalorder %s24, 0
        %s227 = scalar_select %p226, %s24, 0
        %s228 = smul.addr %s227, 2
        %s229 = smul.addr %s225, 2
        %s230 = sadd.s32 %s228, %s229
        %s231 = smul.addr %s230, 8
        %s232 = scalar_lea.vmem %s2, %s231
        %v233 = vld [vmem:[%s183] sm:$0x3]
        %v234 = vld [vmem:[%s183 + $0x2] sm:$0x3]
        %v235 = vld [vmem:[%s183 + $0x4] sm:$0x3]
        %v236 = vld [vmem:[%s183 + $0x6] sm:$0x3]
        %vm237 = vcmask 1041408
        %v238 = vsel %vm237, %v233, -inf
        %v239 = vsel %vm237, %v234, -inf
        %v240 = vsel %vm237, %v235, -inf
        %v241 = vsel %vm237, %v236, -inf
        %v242 = vmax.f32 %v238, %v239
        %v243 = vmax.f32 %v240, %v241
        %v244 = vmax.f32 %v242, %v243
        %v245 = vsub.f32 %v233, %v244
        %v246 = vsub.f32 %v234, %v244
        %v247 = vsub.f32 %v235, %v244
        %v248 = vsub.f32 %v236, %v244
        %v249 = vmul.f32 %v245, 1.442695
        %v250 = vpow.pop %v249
        %v251 = vmul.f32 %v246, 1.442695
        %v252 = vpow.pop %v251
        %v253 = vmul.f32 %v247, 1.442695
        %v254 = vpow.pop %v253
        %v255 = vmul.f32 %v248, 1.442695
        %v256 = vpow.pop %v255
        %v257 = vsel %vm237, %v250, 0.0
        %v258 = vsel %vm237, %v252, 0.0
        %v259 = vadd.f32 %v257, %v258
        %v260 = vsel %vm237, %v254, 0.0
        %v261 = vadd.f32 %v259, %v260
        %v262 = vsel %vm237, %v256, 0.0
        %v263 = vadd.f32 %v261, %v262
        %v264 = vrcp.pop %v263
        %v265 = vmul.f32 %v263, %v264
        %v266 = vsub.f32 2.0, %v265
        %v267 = vmul.f32 %v264, %v266
        %v268 = vmul.f32 %v250, %v267
        %v269 = vmul.f32 %v252, %v267
        %v270 = vmul.f32 %v254, %v267
        %v271 = vmul.f32 %v256, %v267
        %v272 = vld [vmem:[%s193] sm:$0x3]
        %vm273 = vcmp.eq.s32.totalorder %v272, 0
        %v274 = vmul.f32 %v268, %v268
        %v275 = vsel %vm273, %v268, 0.0
        %v276 = vsel %vm237, %v275, 0.0
        %v277 = vrot.slane %v276, 4
        %v278 = vadd.f32 %v276, %v277
        %v279 = vrot.slane %v278, 2
        %v280 = vadd.f32 %v278, %v279
        %v281 = vrot.slane %v280, 1
        %v282 = vadd.f32 %v280, %v281
        %v283 = vsel %vm237, %v274, 0.0
        %v284 = vrot.slane %v283, 4
        %v285 = vadd.f32 %v283, %v284
        %v286 = vrot.slane %v285, 2
        %v287 = vadd.f32 %v285, %v286
        %v288 = vrot.slane %v287, 1
        %v289 = vadd.f32 %v287, %v288
        %v290 = vsel %vm273, 1, 0
        %v291 = vcvt.s32.f32 %v290
        %v292 = vsel %vm237, %v291, 0.0
        %v293 = vrot.slane %v292, 4
        %v294 = vadd.f32 %v292, %v293
        %v295 = vrot.slane %v294, 2
        %v296 = vadd.f32 %v294, %v295
        %v297 = vrot.slane %v296, 1
        %v298 = vadd.f32 %v296, %v297
        %vm299 = vcmp.eq.s32.totalorder %v272, 1
        %v300 = vmul.f32 %v269, %v269
        %v301 = vsel %vm299, %v269, 0.0
        %v302 = vsel %vm237, %v301, 0.0
        %v303 = vrot.slane %v302, 4
        %v304 = vadd.f32 %v302, %v303
        %v305 = vrot.slane %v304, 2
        %v306 = vadd.f32 %v304, %v305
        %v307 = vrot.slane %v306, 1
        %v308 = vadd.f32 %v306, %v307
        %v309 = vsel %vm237, %v300, 0.0
        %v310 = vrot.slane %v309, 4
        %v311 = vadd.f32 %v309, %v310
        %v312 = vrot.slane %v311, 2
        %v313 = vadd.f32 %v311, %v312
        %v314 = vrot.slane %v313, 1
        %v315 = vadd.f32 %v313, %v314
        %v316 = vsel %vm299, 1, 0
        %v317 = vcvt.s32.f32 %v316
        %v318 = vsel %vm237, %v317, 0.0
        %v319 = vrot.slane %v318, 4
        %v320 = vadd.f32 %v318, %v319
        %v321 = vrot.slane %v320, 2
        %v322 = vadd.f32 %v320, %v321
        %v323 = vrot.slane %v322, 1
        %v324 = vadd.f32 %v322, %v323
        %vm325 = vcmp.eq.s32.totalorder %v272, 2
        %v326 = vmul.f32 %v270, %v270
        %v327 = vsel %vm325, %v270, 0.0
        %v328 = vsel %vm237, %v327, 0.0
        %v329 = vrot.slane %v328, 4
        %v330 = vadd.f32 %v328, %v329
        %v331 = vrot.slane %v330, 2
        %v332 = vadd.f32 %v330, %v331
        %v333 = vrot.slane %v332, 1
        %v334 = vadd.f32 %v332, %v333
        %v335 = vsel %vm237, %v326, 0.0
        %v336 = vrot.slane %v335, 4
        %v337 = vadd.f32 %v335, %v336
        %v338 = vrot.slane %v337, 2
        %v339 = vadd.f32 %v337, %v338
        %v340 = vrot.slane %v339, 1
        %v341 = vadd.f32 %v339, %v340
        %v342 = vsel %vm325, 1, 0
        %v343 = vcvt.s32.f32 %v342
        %v344 = vsel %vm237, %v343, 0.0
        %v345 = vrot.slane %v344, 4
        %v346 = vadd.f32 %v344, %v345
        %v347 = vrot.slane %v346, 2
        %v348 = vadd.f32 %v346, %v347
        %v349 = vrot.slane %v348, 1
        %v350 = vadd.f32 %v348, %v349
        %vm351 = vcmp.eq.s32.totalorder %v272, 3
        %v352 = vmul.f32 %v271, %v271
        %v353 = vsel %vm351, %v271, 0.0
        %v354 = vsel %vm237, %v353, 0.0
        %v355 = vrot.slane %v354, 4
        %v356 = vadd.f32 %v354, %v355
        %v357 = vrot.slane %v356, 2
        %v358 = vadd.f32 %v356, %v357
        %v359 = vrot.slane %v358, 1
        %v360 = vadd.f32 %v358, %v359
        %v361 = vsel %vm237, %v352, 0.0
        %v362 = vrot.slane %v361, 4
        %v363 = vadd.f32 %v361, %v362
        %v364 = vrot.slane %v363, 2
        %v365 = vadd.f32 %v363, %v364
        %v366 = vrot.slane %v365, 1
        %v367 = vadd.f32 %v365, %v366
        %v368 = vsel %vm351, 1, 0
        %v369 = vcvt.s32.f32 %v368
        %v370 = vsel %vm237, %v369, 0.0
        %v371 = vrot.slane %v370, 4
        %v372 = vadd.f32 %v370, %v371
        %v373 = vrot.slane %v372, 2
        %v374 = vadd.f32 %v372, %v373
        %v375 = vrot.slane %v374, 1
        %v376 = vadd.f32 %v374, %v375
        %vm377 = vcmask 1040384
        %v378 = vsel %vm377, %v282, %v308
        %v379 = vsel %vm237, %v378, %v334
        %vm380 = vcmask 1042432
        %v381 = vsel %vm380, %v379, %v360
        %vm382 = vcmask 1043456
        %v383 = vsel %vm382, %v381, %v289
        %vm384 = vcmask 1044480
        %v385 = vsel %vm384, %v383, %v315
        %vm386 = vcmask 1045504
        %v387 = vsel %vm386, %v385, %v341
        %vm388 = vcmask 1046528
        %v389 = vsel %vm388, %v387, %v367
        %v390 = vsel %vm377, %v298, %v324
        %v391 = vsel %vm237, %v390, %v350
        %v392 = vsel %vm380, %v391, %v376
        %393 = vst [vmem:[%s232] sm:$0xff] %v389
        %394 = vst [vmem:[%s232 + $0x8] sm:$0xf] %v392
        %p395 = scmp.lt.s32.totalorder %s23, 1
        %s396 = scalar_select %p395, %s23, 1
        %p397 = scmp.lt.s32.totalorder %s24, 0
        %s398 = scalar_select %p397, %s24, 0
        %s399 = smul.addr %s398, 2
        %s400 = smul.addr %s396, 2
        %s401 = sadd.s32 %s399, %s400
        %s402 = smul.addr %s401, 8
        %s403 = scalar_lea.vmem %s2, %s402
        // Predicated region
        $region37: #{tpu_custom_call.1} parent=27 // pred_check
          %p404 = pneg %p107
        $region38: #{tpu_custom_call.1} parent=27 // pred_check_branch
          %406 = sbr.rel (%p404) target = $region40
        $region39: #{tpu_custom_call.1} parent=27 // pred_region
          _
        $region40: #{tpu_custom_call.1} parent=27 // pred_fallthru
          _
      $region28: #{tpu_custom_call.1} parent=5 // pred_fallthru
        _
      %p407 = scmp.le.s32.totalorder 2, %s14
      // Predicated region
      $region41: #{tpu_custom_call.1} parent=5 // pred_check
        %p408 = pneg %p407
      $region42: #{tpu_custom_call.1} parent=5 // pred_check_branch
        %410 = sbr.rel (%p408) target = $region44
      $region43: #{tpu_custom_call.1} parent=5 // pred_region
        %s411 = ssub.s32 %s14, 2
        // Predicated region
        $region45: #{tpu_custom_call.1} parent=43 // pred_check
          %p412 = pneg %p113
        $region46: #{tpu_custom_call.1} parent=43 // pred_check_branch
          %414 = sbr.rel (%p412) target = $region48
        $region47: #{tpu_custom_call.1} parent=43 // pred_region
          %p415 = scmp.lt.s32.totalorder %s25, 1
          %s416 = scalar_select %p415, %s25, 1
          %p417 = scmp.lt.s32.totalorder %s26, 0
          %s418 = scalar_select %p417, %s26, 0
          %s419 = smul.addr %s418, 2
          %s420 = smul.addr %s416, 2
          %s421 = sadd.s32 %s419, %s420
          %s422 = smul.addr %s421, 8
          %s423 = scalar_lea.vmem %s2, %s422
        $region48: #{tpu_custom_call.1} parent=43 // pred_fallthru
          _
      $region44: #{tpu_custom_call.1} parent=5 // pred_fallthru
        _
    $region6: #{tpu_custom_call.1} parent=1 // loop_footer
      %s18 = sadd.s32 1, %s14
    $region7: #{tpu_custom_call.1} parent=1 // loop_footer_branch
      %13 = sbr.rel target = $region3
    $region8: #{tpu_custom_call.1} parent=1 // loop_exit
      _
    %424 = vsyncpa [#allocation3], 1
    %s425 = scalar_lea.sflag [#allocation3], 1
    %426 = vsyncpa %s425, 1
    %427 = vsyncpa [#allocation5], 1
    %s428 = scalar_lea.sflag [#allocation5], 1
    %429 = vsyncpa %s428, 1

</llo_original>
